<compile_context>
chip_gen: v6e
topology: v6e:2x2x1
jax: 0.10.0
libtpu: 0.0.40
codegen_flags: <defaults>
</compile_context>

<pallas_src>
import math
from functools import partial

import jax
import jax.numpy as jnp
from jax.experimental import pallas as pl
from jax.experimental.pallas import tpu as pltpu

DIM = 128
HALF = DIM // 2
BLOCK_B = 2048       # max batch-tile rows (perf review: sweep 1024-2048)
MIN_SPLIT = 256      # only split a single-tile batch if each half has >= this many rows

# aux row layout ([8, 128] f32)
_ROW_FREQ, _ROW_PHASE, _ROW_MB1, _ROW_PB1, _ROW_B2F, _ROW_OB1, _ROW_OB2, _ROW_PAD = range(8)


def dynamics_kernel(t_ref, noi_ref, w1_ref, w2_ref, aux_ref, out_ref, *, wide_mxu):
    aux = aux_ref[...]                                    # [8, 128] f32 (biases / freqs / phase)
    t = t_ref[...]                                        # [TB, 1]  f32
    noi_bf = noi_ref[...]                                 # [TB,128] bf16
    noi = noi_bf.astype(jnp.float32)

    # Timestep embedding: cos(t*f + phase) == cat([cos(t*f), sin(t*f)], -1).
    # (cos argument stays f32: t can be ~1000 rad, bf16 args would be garbage.)
    temb = jnp.cos(t * aux[_ROW_FREQ:_ROW_FREQ + 1, :]
                   + aux[_ROW_PHASE:_ROW_PHASE + 1, :])   # [TB, 128] f32

    def silu(h):
        # Exact identity: h*sigmoid(h) == 0.5*h*(1+tanh(h/2)).  One EUP op per
        # element, no exp + VPU divide.
        return 0.5 * h * (1.0 + jnp.tanh(0.5 * h))

    def mxu(x, w):
        # bf16 MXU matmul, f32 accumulation.
        return jnp.dot(x.astype(jnp.bfloat16), w, preferred_element_type=jnp.float32)

    if wide_mxu:
        # v6e/v7x (256-wide MXU): one block-diagonal 256x256 matmul produces
        # [h_m | h_p] directly (halves MXU pushes, no h_cat concat).
        lhs = jnp.concatenate([noi_bf, temb.astype(jnp.bfloat16)], axis=-1)     # [TB, 256]
        b1 = jnp.concatenate([aux[_ROW_MB1:_ROW_MB1 + 1, :],
                              aux[_ROW_PB1:_ROW_PB1 + 1, :]], axis=-1)          # [1, 256]
        h_cat = silu(jnp.dot(lhs, w1_ref[...], preferred_element_type=jnp.float32) + b1)
    else:
        # v5e and older (128-wide MXUs): two 128x128 matmuls, then concat.
        h_m = silu(mxu(noi_bf, w1_ref[0:DIM, :]) + aux[_ROW_MB1:_ROW_MB1 + 1, :])
        h_p = silu(mxu(temb, w1_ref[DIM:2 * DIM, :]) + aux[_ROW_PB1:_ROW_PB1 + 1, :])
        h_cat = jnp.concatenate([h_m, h_p], axis=-1)                            # [TB, 256]

    # Fused second layers (K=256): [h_m | h_p] @ [m_w2; p_w2] + (m_b2 + p_b2)
    #                            == mlp2(noidata) + Proj(temb)
    hidden = mxu(h_cat, w2_ref[0:2 * DIM, :]) + aux[_ROW_B2F:_ROW_B2F + 1, :]

    # Output MLP; final bias folded into the residual.
    h_o = silu(mxu(hidden, w2_ref[2 * DIM:3 * DIM, :]) + aux[_ROW_OB1:_ROW_OB1 + 1, :])
    out = mxu(h_o, w2_ref[3 * DIM:4 * DIM, :])
    out_ref[...] = (noi - aux[_ROW_OB2:_ROW_OB2 + 1, :]) - out                  # noidata - output


def _round_up(x, m):
    return (x + m - 1) // m * m


def _choose_tile(batch):
    """Batch tile: as large as BLOCK_B, but always >= 2 grid steps for big batches
    (v7x megacore) and balanced so padding waste stays < one tile."""
    b8 = _round_up(batch, 8)
    nsteps = -(-b8 // BLOCK_B)                 # ceil
    if nsteps == 1 and b8 >= 2 * MIN_SPLIT:
        nsteps = 2                             # give v7x's second TensorCore a step
    return _round_up(-(-b8 // nsteps), 8)


_WIDE_MXU = None


def _wide_mxu():
    """True on 256-wide-MXU chips (v6e / v7x); block-diag fusion only pays there."""
    global _WIDE_MXU
    if _WIDE_MXU is None:
        try:
            kind = jax.devices()[0].device_kind.lower()
        except Exception:
            kind = ""
        _WIDE_MXU = not any(v in kind for v in ("v2", "v3", "v4", "v5"))
    return _WIDE_MXU


def _pack_params(params, wide_mxu):
    """Pack weights into bf16 slabs and biases + freq/phase into one [8,128] f32 tile."""
    if wide_mxu:
        zero = jnp.zeros((DIM, DIM), jnp.float32)
        w1 = jnp.concatenate(
            [jnp.concatenate([params["m_w1"], zero], axis=1),
             jnp.concatenate([zero, params["p_w1"]], axis=1)], axis=0)    # [256, 256]
    else:
        w1 = jnp.concatenate([params["m_w1"], params["p_w1"]], axis=0)    # [256, 128]
    w1 = w1.astype(jnp.bfloat16)

    w2 = jnp.concatenate(
        [params["m_w2"], params["p_w2"],        # fused second layer (K=256)
         params["o_w1"], params["o_w2"]],       # out MLP
        axis=0).astype(jnp.bfloat16)            # [512, 128]

    freqs_half = jnp.exp(
        -math.log(10000.0) * jnp.arange(HALF, dtype=jnp.float32) / HALF)
    freqs_full = jnp.concatenate([freqs_half, freqs_half])               # [128]
    phase = jnp.concatenate(
        [jnp.zeros((HALF,), jnp.float32),
         jnp.full((HALF,), -math.pi / 2.0, jnp.float32)])                # [128]

    aux = jnp.stack(
        [freqs_full,
         phase,
         params["m_b1"][0],
         params["p_b1"][0],
         (params["m_b2"] + params["p_b2"])[0],   # fused second-layer bias
         params["o_b1"][0],
         params["o_b2"][0],
         jnp.zeros((DIM,), jnp.float32)],
        axis=0).astype(jnp.float32)              # [8, 128]
    return w1, w2, aux


@partial(jax.jit, static_argnames=("wide_mxu",))
def _dynamics_forward(t, noidata, params, *, wide_mxu):
    B = noidata.shape[0]
    w1, w2, aux = _pack_params(params, wide_mxu)

    tb = _choose_tile(B)
    b_pad = _round_up(B, tb)

    t2d = t.astype(jnp.float32).reshape(B, 1)
    noi = noidata.astype(jnp.bfloat16)           # bf16 HBM I/O (kernel is HBM-bound)
    if b_pad != B:
        t2d = jnp.pad(t2d, ((0, b_pad - B), (0, 0)))
        noi = jnp.pad(noi, ((0, b_pad - B), (0, 0)))

    w1_rows, w1_cols = w1.shape
    cost = pl.CostEstimate(
        flops=12 * b_pad * DIM * DIM,
        transcendentals=4 * b_pad * DIM,
        bytes_accessed=b_pad * (2 * DIM + 4 + 4 * DIM)
        + 2 * (w1_rows * w1_cols + 4 * DIM * DIM) + 4 * 8 * DIM,
    )

    out = pl.pallas_call(
        partial(dynamics_kernel, wide_mxu=wide_mxu),
        out_shape=jax.ShapeDtypeStruct((b_pad, DIM), jnp.float32),
        grid=(b_pad // tb,),
        in_specs=[
            pl.BlockSpec((tb, 1), lambda i: (i, 0)),              # t
            pl.BlockSpec((tb, DIM), lambda i: (i, 0)),            # noidata (bf16)
            pl.BlockSpec((w1_rows, w1_cols), lambda i: (0, 0)),   # first-layer weights (resident)
            pl.BlockSpec((4 * DIM, DIM), lambda i: (0, 0)),       # remaining weights (resident)
            pl.BlockSpec((8, DIM), lambda i: (0, 0)),             # biases / freqs / phase (resident)
        ],
        out_specs=pl.BlockSpec((tb, DIM), lambda i: (i, 0)),
        compiler_params=pltpu.CompilerParams(
            dimension_semantics=("parallel",),
            vmem_limit_bytes=32 * 1024 * 1024),
        cost_estimate=cost,
    )(t2d, noi, w1, w2, aux)
    return out[:B]


def dynamics_forward(t, noidata, params):
    """t: [B] f32, noidata: [B, 128] f32, params: dict of weights."""
    return _dynamics_forward(t, noidata, params, wide_mxu=_wide_mxu())


def init_params(key):
    """Deterministic synthetic weights, shapes from the module __init__."""
    params = {}
    names = ["p", "m", "o"]  # Proj, mlp2, out
    keys = jax.random.split(key, len(names) * 4)
    k = 0
    scale = 1.0 / math.sqrt(DIM)
    for n in names:
        params[f"{n}_w1"] = scale * jax.random.normal(keys[k], (DIM, DIM), jnp.float32); k += 1
        params[f"{n}_b1"] = scale * jax.random.normal(keys[k], (1, DIM), jnp.float32);   k += 1
        params[f"{n}_w2"] = scale * jax.random.normal(keys[k], (DIM, DIM), jnp.float32); k += 1
        params[f"{n}_b2"] = scale * jax.random.normal(keys[k], (1, DIM), jnp.float32);   k += 1
    return params


def reference(t, noidata, params):
    """Pure-JAX f32 reference mirroring the PyTorch forward."""
    freqs = jnp.exp(-math.log(10000.0) * jnp.arange(HALF, dtype=jnp.float32) / HALF)
    a = t[:, None].astype(jnp.float32) * freqs[None]
    temb = jnp.concatenate([jnp.cos(a), jnp.sin(a)], axis=-1)

    def mlp(x, n):
        h = x @ params[f"{n}_w1"] + params[f"{n}_b1"]
        h = h * jax.nn.sigmoid(h)
        return h @ params[f"{n}_w2"] + params[f"{n}_b2"]

    target_hidden = mlp(noidata, "m")
    temb_p = mlp(temb, "p")
    out = mlp(target_hidden + temb_p, "o")
    return noidata - out


if __name__ == "__main__":
    key = jax.random.PRNGKey(0)
    k_param, k_noi, k_t = jax.random.split(key, 3)

    B = 8
    params = init_params(k_param)
    noidata = jax.random.normal(k_noi, (B, DIM), jnp.float32)
    t = jax.random.uniform(k_t, (B,), jnp.float32, minval=0.0, maxval=1000.0)

    out = jax.block_until_ready(dynamics_forward(t, noidata, params))
    ref = reference(t, noidata, params)

    assert out.shape == (B, DIM)
    # bf16 matmul inputs + bf16 noidata stream (f32 accumulation) -> relaxed
    # tolerance vs the f32 reference.
    max_err = float(jnp.max(jnp.abs(out - ref)))
    assert jnp.allclose(out, ref, atol=3e-2, rtol=3e-2), f"mismatch vs reference: {max_err}"

    print("KERNEL_OK")
</pallas_src>

<mosaic_0001>
module attributes {stable_mosaic.version = 11 : i64} {
  func.func @dynamics_kernel(%arg0: i32, %arg1: memref<8x1xf32, #tpu.memory_space<vmem>>, %arg2: memref<8x128xbf16, #tpu.memory_space<vmem>>, %arg3: memref<256x256xbf16, #tpu.memory_space<vmem>>, %arg4: memref<512x128xbf16, #tpu.memory_space<vmem>>, %arg5: memref<8x128xf32, #tpu.memory_space<vmem>>, %arg6: memref<8x128xf32, #tpu.memory_space<vmem>>) attributes {dimension_semantics = [#tpu.dimension_semantics<parallel>], iteration_bounds = array<i64: 1>, scalar_prefetch = 0 : i64, scratch_operands = 0 : i64, tpu.core_type = #tpu.core_type<tc>, window_params = [{transform_indices = @transform_0, window_bounds = array<i64: 8, 1>}, {transform_indices = @transform_1, window_bounds = array<i64: 8, 128>}, {pipeline_mode = #tpu.pipeline_mode<synchronous>, transform_indices = @transform_2, window_bounds = array<i64: 256, 256>}, {pipeline_mode = #tpu.pipeline_mode<synchronous>, transform_indices = @transform_3, window_bounds = array<i64: 512, 128>}, {pipeline_mode = #tpu.pipeline_mode<synchronous>, transform_indices = @transform_4, window_bounds = array<i64: 8, 128>}, {transform_indices = @transform_5, window_bounds = array<i64: 8, 128>}]} {
    %c0 = arith.constant 0 : index
    %c0_0 = arith.constant 0 : index
    %0 = vector.load %arg5[%c0, %c0_0] : memref<8x128xf32, #tpu.memory_space<vmem>>, vector<8x128xf32>
    %c0_1 = arith.constant 0 : index
    %c0_2 = arith.constant 0 : index
    %1 = vector.load %arg1[%c0_1, %c0_2] : memref<8x1xf32, #tpu.memory_space<vmem>>, vector<8x1xf32>
    %c0_3 = arith.constant 0 : index
    %c0_4 = arith.constant 0 : index
    %2 = vector.load %arg2[%c0_3, %c0_4] : memref<8x128xbf16, #tpu.memory_space<vmem>>, vector<8x128xbf16>
    %3 = arith.extf %2 : vector<8x128xbf16> to vector<8x128xf32>
    %4 = vector.extract_strided_slice %0 {offsets = [0, 0], sizes = [1, 128], strides = [1, 1]} : vector<8x128xf32> to vector<1x128xf32>
    %5 = vector.broadcast %1 : vector<8x1xf32> to vector<8x128xf32>
    %6 = vector.broadcast %4 : vector<1x128xf32> to vector<8x128xf32>
    %7 = arith.mulf %5, %6 : vector<8x128xf32>
    %8 = vector.extract_strided_slice %0 {offsets = [1, 0], sizes = [1, 128], strides = [1, 1]} : vector<8x128xf32> to vector<1x128xf32>
    %9 = vector.broadcast %8 : vector<1x128xf32> to vector<8x128xf32>
    %10 = arith.addf %7, %9 : vector<8x128xf32>
    %11 = math.cos %10 : vector<8x128xf32>
    %12 = arith.truncf %11 : vector<8x128xf32> to vector<8x128xbf16>
    %13 = tpu.concatenate %2, %12 in 1 : vector<8x128xbf16>, vector<8x128xbf16> -> vector<8x256xbf16>
    %14 = vector.extract_strided_slice %0 {offsets = [2, 0], sizes = [1, 128], strides = [1, 1]} : vector<8x128xf32> to vector<1x128xf32>
    %15 = vector.extract_strided_slice %0 {offsets = [3, 0], sizes = [1, 128], strides = [1, 1]} : vector<8x128xf32> to vector<1x128xf32>
    %16 = tpu.concatenate %14, %15 in 1 : vector<1x128xf32>, vector<1x128xf32> -> vector<1x256xf32>
    %c0_5 = arith.constant 0 : index
    %c0_6 = arith.constant 0 : index
    %17 = vector.load %arg3[%c0_5, %c0_6] : memref<256x256xbf16, #tpu.memory_space<vmem>>, vector<256x256xbf16>
    %cst = arith.constant dense<0.000000e+00> : vector<8x256xf32>
    %18 = tpu.matmul %13, %17, %cst {dimension_numbers = #tpu.dot_dimension_numbers<[1], [0], [0], [1], [0, 0, 1, 1], [], []>} : vector<8x256xbf16>, vector<256x256xbf16>, vector<8x256xf32> -> vector<8x256xf32>
    %19 = vector.broadcast %16 : vector<1x256xf32> to vector<8x256xf32>
    %20 = arith.addf %18, %19 : vector<8x256xf32>
    %cst_7 = arith.constant 5.000000e-01 : f32
    %21 = vector.broadcast %cst_7 : f32 to vector<8x256xf32>
    %22 = arith.mulf %21, %20 : vector<8x256xf32>
    %cst_8 = arith.constant 5.000000e-01 : f32
    %23 = vector.broadcast %cst_8 : f32 to vector<8x256xf32>
    %24 = arith.mulf %23, %20 : vector<8x256xf32>
    %25 = math.tanh %24 : vector<8x256xf32>
    %cst_9 = arith.constant 1.000000e+00 : f32
    %26 = vector.broadcast %cst_9 : f32 to vector<8x256xf32>
    %27 = arith.addf %26, %25 : vector<8x256xf32>
    %28 = arith.mulf %22, %27 : vector<8x256xf32>
    %c0_10 = arith.constant 0 : index
    %c0_11 = arith.constant 0 : index
    %29 = vector.load %arg4[%c0_10, %c0_11] : memref<512x128xbf16, #tpu.memory_space<vmem>>, vector<256x128xbf16>
    %30 = arith.truncf %28 : vector<8x256xf32> to vector<8x256xbf16>
    %cst_12 = arith.constant dense<0.000000e+00> : vector<8x128xf32>
    %31 = tpu.matmul %30, %29, %cst_12 {dimension_numbers = #tpu.dot_dimension_numbers<[1], [0], [0], [1], [0, 0, 1, 1], [], []>} : vector<8x256xbf16>, vector<256x128xbf16>, vector<8x128xf32> -> vector<8x128xf32>
    %32 = vector.extract_strided_slice %0 {offsets = [4, 0], sizes = [1, 128], strides = [1, 1]} : vector<8x128xf32> to vector<1x128xf32>
    %33 = vector.broadcast %32 : vector<1x128xf32> to vector<8x128xf32>
    %34 = arith.addf %31, %33 : vector<8x128xf32>
    %c256 = arith.constant 256 : index
    %c0_13 = arith.constant 0 : index
    %35 = vector.load %arg4[%c256, %c0_13] : memref<512x128xbf16, #tpu.memory_space<vmem>>, vector<128x128xbf16>
    %36 = arith.truncf %34 : vector<8x128xf32> to vector<8x128xbf16>
    %cst_14 = arith.constant dense<0.000000e+00> : vector<8x128xf32>
    %37 = tpu.matmul %36, %35, %cst_14 {dimension_numbers = #tpu.dot_dimension_numbers<[1], [0], [0], [1], [0, 0, 1, 1], [], []>} : vector<8x128xbf16>, vector<128x128xbf16>, vector<8x128xf32> -> vector<8x128xf32>
    %38 = vector.extract_strided_slice %0 {offsets = [5, 0], sizes = [1, 128], strides = [1, 1]} : vector<8x128xf32> to vector<1x128xf32>
    %39 = vector.broadcast %38 : vector<1x128xf32> to vector<8x128xf32>
    %40 = arith.addf %37, %39 : vector<8x128xf32>
    %cst_15 = arith.constant 5.000000e-01 : f32
    %41 = vector.broadcast %cst_15 : f32 to vector<8x128xf32>
    %42 = arith.mulf %41, %40 : vector<8x128xf32>
    %cst_16 = arith.constant 5.000000e-01 : f32
    %43 = vector.broadcast %cst_16 : f32 to vector<8x128xf32>
    %44 = arith.mulf %43, %40 : vector<8x128xf32>
    %45 = math.tanh %44 : vector<8x128xf32>
    %cst_17 = arith.constant 1.000000e+00 : f32
    %46 = vector.broadcast %cst_17 : f32 to vector<8x128xf32>
    %47 = arith.addf %46, %45 : vector<8x128xf32>
    %48 = arith.mulf %42, %47 : vector<8x128xf32>
    %c384 = arith.constant 384 : index
    %c0_18 = arith.constant 0 : index
    %49 = vector.load %arg4[%c384, %c0_18] : memref<512x128xbf16, #tpu.memory_space<vmem>>, vector<128x128xbf16>
    %50 = arith.truncf %48 : vector<8x128xf32> to vector<8x128xbf16>
    %cst_19 = arith.constant dense<0.000000e+00> : vector<8x128xf32>
    %51 = tpu.matmul %50, %49, %cst_19 {dimension_numbers = #tpu.dot_dimension_numbers<[1], [0], [0], [1], [0, 0, 1, 1], [], []>} : vector<8x128xbf16>, vector<128x128xbf16>, vector<8x128xf32> -> vector<8x128xf32>
    %52 = vector.extract_strided_slice %0 {offsets = [6, 0], sizes = [1, 128], strides = [1, 1]} : vector<8x128xf32> to vector<1x128xf32>
    %53 = vector.broadcast %52 : vector<1x128xf32> to vector<8x128xf32>
    %54 = arith.subf %3, %53 : vector<8x128xf32>
    %55 = arith.subf %54, %51 : vector<8x128xf32>
    %c0_20 = arith.constant 0 : index
    %c0_21 = arith.constant 0 : index
    %56 = vector.load %arg6[%c0_20, %c0_21] : memref<8x128xf32, #tpu.memory_space<vmem>>, vector<8x128xf32>
    tpu.vector_store %arg6[%c0_20, %c0_21], %55 {strides = array<i32>} : memref<8x128xf32, #tpu.memory_space<vmem>>, vector<8x128xf32>,
    return
  }
  func.func @transform_0(%arg0: i32) -> (i32, i32) {
    %c0_i32 = arith.constant 0 : i32
    %c0_i32_0 = arith.constant 0 : i32
    return %arg0, %c0_i32 : i32, i32
  }
  func.func @transform_1(%arg0: i32) -> (i32, i32) {
    %c0_i32 = arith.constant 0 : i32
    %c0_i32_0 = arith.constant 0 : i32
    return %arg0, %c0_i32 : i32, i32
  }
  func.func @transform_2(%arg0: i32) -> (i32, i32) {
    %c0_i32 = arith.constant 0 : i32
    %c0_i32_0 = arith.constant 0 : i32
    %c0_i32_1 = arith.constant 0 : i32
    return %c0_i32, %c0_i32_0 : i32, i32
  }
  func.func @transform_3(%arg0: i32) -> (i32, i32) {
    %c0_i32 = arith.constant 0 : i32
    %c0_i32_0 = arith.constant 0 : i32
    %c0_i32_1 = arith.constant 0 : i32
    return %c0_i32, %c0_i32_0 : i32, i32
  }
  func.func @transform_4(%arg0: i32) -> (i32, i32) {
    %c0_i32 = arith.constant 0 : i32
    %c0_i32_0 = arith.constant 0 : i32
    %c0_i32_1 = arith.constant 0 : i32
    return %c0_i32, %c0_i32_0 : i32, i32
  }
  func.func @transform_5(%arg0: i32) -> (i32, i32) {
    %c0_i32 = arith.constant 0 : i32
    %c0_i32_0 = arith.constant 0 : i32
    return %arg0, %c0_i32 : i32, i32
  }
}

</mosaic_0001>

<llo_original>
// kernel: _dynamics_forward.1
$region0: #{_dynamics_forward.1}
  #allocation0 [shape = 'u32[]', space=smem, size = 0x4, offset = 0x4, fixed_abs, tag = 'smem constant byte address 0x4 - core index']
  #allocation1 [shape = 'u32[144,128]{1,0:T(1,128)}', space=vmem, size = 0x12000, scoped, tag = 'internal scratch']
  %s0 = inlined_call_operand.vmem [shape: f32[8,1], index: 0, kind: input, shape index: {}]
  %s1 = inlined_call_operand.vmem [shape: bf16[8,128], index: 1, kind: input, shape index: {}]
  %s2 = inlined_call_operand.vmem [shape: bf16[256,256], index: 2, kind: input, shape index: {}]
  %s3 = inlined_call_operand.vmem [shape: bf16[512,128], index: 3, kind: input, shape index: {}]
  %s4 = inlined_call_operand.vmem [shape: f32[8,128], index: 4, kind: input, shape index: {}]
  %s5 = inlined_call_operand.hbm [shape: f32[8,128], index: 5, kind: output, shape index: {}]
  %s6 = sld [smem:[#allocation0]]
  $region30: #{_dynamics_forward.1} parent=0
    _
  %s8 = ssub.s32 1, %s6
  %s9 = scalar_select 0, %s8, %s6
  $region1: #{_dynamics_forward.1} parent=0
    #allocation2 [shape = 'u8[4096]{0}', space=vmem, size = 0x1000, scoped, tag = 'output window, operand 0, single buffered']
    #allocation3 [shape = 's32[1]{0}', space=sflag, size = 0x4, scoped, tag = 'scoped memory for _dynamics_forward.1']
    %10 = vsyncpa [#allocation3], 0
    // Predicated region
    $region2: #{_dynamics_forward.1} parent=1 // pred_check
      _
    $region3: #{_dynamics_forward.1} parent=1 // pred_check_branch
      %12 = sbr.rel (0) target = $region5
    $region4: #{_dynamics_forward.1} parent=1 // pred_region
      _
    $region5: #{_dynamics_forward.1} parent=1 // pred_fallthru
      _
    // Predicated region
    $region6: #{_dynamics_forward.1} parent=1 // pred_check
      _
    $region7: #{_dynamics_forward.1} parent=1 // pred_check_branch
      %14 = sbr.rel (0) target = $region9
    $region8: #{_dynamics_forward.1} parent=1 // pred_region
      _
    $region9: #{_dynamics_forward.1} parent=1 // pred_fallthru
      _
    // Predicated region
    $region10: #{_dynamics_forward.1} parent=1 // pred_check
      _
    $region11: #{_dynamics_forward.1} parent=1 // pred_check_branch
      %16 = sbr.rel (0) target = $region13
    $region12: #{_dynamics_forward.1} parent=1 // pred_region
      _
    $region13: #{_dynamics_forward.1} parent=1 // pred_fallthru
      _
    // Predicated region
    $region14: #{_dynamics_forward.1} parent=1 // pred_check
      _
    $region15: #{_dynamics_forward.1} parent=1 // pred_check_branch
      %18 = sbr.rel (0) target = $region17
    $region16: #{_dynamics_forward.1} parent=1 // pred_region
      _
    $region17: #{_dynamics_forward.1} parent=1 // pred_fallthru
      _
    // Predicated region
    $region18: #{_dynamics_forward.1} parent=1 // pred_check
      _
    $region19: #{_dynamics_forward.1} parent=1 // pred_check_branch
      %20 = sbr.rel (0) target = $region21
    $region20: #{_dynamics_forward.1} parent=1 // pred_region
      _
    $region21: #{_dynamics_forward.1} parent=1 // pred_fallthru
      _
    %v22 = vld [vmem:[%s4] sm:$0xff]
    %v23 = vld [vmem:[%s0] sm:$0xff]
    %v24 = vld [vmem:[%s1] sm:$0xf]
    %v25 = vunpack.c.l.bf16 %v24
    %27 = vset.pattern.permute.xlu0 0
    %28 = vperm.xlu0 %27, %v23
    %v29 = vpop.permute.xlu0 %28
    %v31 = vlaneseq
    %v32 = vshrl.u32 %v31, 7
    %v33 = vsub.s32 0, %v32
    %v34 = vrot.slane %v22, %v33
    %v35 = vmul.f32 %v29, %v34
    %v36 = vlaneseq
    %v37 = vshrl.u32 %v36, 7
    %v38 = vsub.s32 1, %v37
    %v39 = vrot.slane %v22, %v38
    %v40 = vadd.f32 %v35, %v39
    %v41 = vand.u32 2147483647, %v40
    %vm42 = vcmp.le.f32.partialorder %v41, 0.7853982
    %vm43 = vcmp.lt.s32.totalorder %v40, 0
    %v44 = vand.u32 %v40, 2139095040
    %v45 = vshrl.u32 %v44, 23
    %v46 = vsub.s32 %v45, 127
    %v47 = vand.u32 2147483647, %v40
    %v48 = vand.u32 %v47, 8388607
    %v49 = vor.u32 %v48, 8388608
    %v50 = vsub.s32 0, %v49
    %v51 = vadd.s32 %v46, 1
    %vm52 = vcmp.gt.s32.totalorder %v51, 0
    %v53 = vsel %vm52, %v51, 0
    %v54 = vshrl.u32 %v53, 5
    %v55 = vand.u32 %v53, 31
    %v56 = vsub.s32 32, %v55
    %v57 = vshrl.u32 683565275, %v56
    %v58 = vshll.u32 683565275, %v55
    %v59 = vshrl.u32 2475754826, %v56
    %v60 = vor.u32 %v58, %v59
    %v61 = vshll.u32 2475754826, %v55
    %v62 = vshrl.u32 2131351028, %v56
    %v63 = vor.u32 %v61, %v62
    %v64 = vshll.u32 2131351028, %v55
    %v65 = vshrl.u32 2102212464, %v56
    %v66 = vor.u32 %v64, %v65
    %v67 = vshll.u32 2102212464, %v55
    %v68 = vshrl.u32 920167782, %v56
    %v69 = vor.u32 %v67, %v68
    %v70 = vshll.u32 920167782, %v55
    %v71 = vshrl.u32 1326507024, %v56
    %v72 = vor.u32 %v70, %v71
    %vm73 = vcmp.lt.s32.totalorder %v54, 1
    %vm74 = vcmp.lt.s32.totalorder %v54, 2
    %vm75 = vcmp.lt.s32.totalorder %v54, 3
    %vm76 = vcmp.lt.s32.totalorder %v54, 4
    %v77 = vsel %vm73, %v57, %v60
    %v78 = vsel %vm76, %v66, 2102212464
    %v79 = vsel %vm75, %v63, %v78
    %v80 = vsel %vm74, %v77, %v79
    %v81 = vsel %vm73, %v60, %v63
    %v82 = vsel %vm76, %v69, 920167782
    %v83 = vsel %vm75, %v66, %v82
    %v84 = vsel %vm74, %v81, %v83
    %v85 = vsel %vm73, %v63, %v66
    %v86 = vsel %vm76, %v72, 1326507024
    %v87 = vsel %vm75, %v69, %v86
    %v88 = vsel %vm74, %v85, %v87
    %v89 = vshll.u32 %v49, 8
    %v90 = vmul.u32.u64.compose %v89, %v88
    %v91 = vextract.low.u32 %v90
    %v92 = vextract.high.u32 %v90
    %v93 = vmul.u32.u64.compose %v89, %v84
    %v94 = vextract.low.u32 %v93
    %v95 = vextract.high.u32 %v93
    %v96 = vmul.u32 %v89, %v80
    %v97 = vadd.s32 %v92, %v94
    %vm98 = vc.u32 %v92, %v94
    %v99 = vadd.s32 %v95, 1
    %v100 = vsel %vm98, %v99, %v95
    %v101 = vadd.s32 %v96, %v100
    %v102 = vadd.s32 %v101, 536870912
    %v103 = vshrl.u32 %v102, 30
    %v104 = vshll.u32 %v103, 30
    %v105 = vsub.s32 %v101, %v104
    %vm106 = vcmp.lt.s32.totalorder %v105, 0
    %v107 = vsub.s32 0, %v105
    %v108 = vsel %vm106, %v107, %v105
    %v109 = vclz %v108
    %v110 = vsub.s32 %v109, 2
    %vm111 = vcmp.gt.s32.totalorder 0, %v110
    %v112 = vsel %vm111, 0, %v110
    %v113 = vsub.s32 32, %v112
    %v114 = vshll.u32 %v105, %v112
    %v115 = vshrl.u32 %v97, %v113
    %v116 = vor.u32 %v114, %v115
    %v117 = vsub.s32 4294967266, %v112
    %v118 = vadd.s32 %v117, 127
    %v119 = vshll.u32 %v118, 23
    %v120 = vor.u32 4788187, %v119
    %v121 = vand.u32 2147483647, %v120
    %v123 = vcvt.s32.f32 %v116
    %v124 = vmul.f32 %v123, %v121
    %v125 = vxor.u32 %v124, 2147483648
    %v126 = vsel %vm43, %v125, %v124
    %v127 = vsub.s32 4, %v103
    %v128 = vsel %vm43, %v127, %v103
    %v129 = vsel %vm42, %v40, %v126
    %v130 = vsel %vm42, 0, %v128
    %v131 = vcosq.f32.pop %v129
    %v132 = vsinq.f32.pop %v129
    %vm133 = vweird.f32 %v40
    %v134 = vand.u32 %v130, 3
    %vm135 = vcmp.lt.s32.totalorder %v134, 2
    %vm136 = vcmp.eq.s32.totalorder %v134, 0
    %v137 = vxor.u32 %v132, 2147483648
    %v138 = vsel %vm136, %v131, %v137
    %vm139 = vcmp.eq.s32.totalorder %v134, 2
    %v140 = vxor.u32 %v131, 2147483648
    %v141 = vsel %vm139, %v140, %v132
    %v142 = vsel %vm135, %v138, %v141
    %v143 = vsel %vm133, nan, %v142
    %v144 = vpack.c.bf16 %v143, %v143
    %v146 = vrot.slane %v22, 1
    %v148 = vld [vmem:[%s2] sm:$0xff]
    %v149 = vld [vmem:[%s2 + $0x8] sm:$0xff]
    %v150 = vld [vmem:[%s2 + $0x10] sm:$0xff]
    %v151 = vld [vmem:[%s2 + $0x18] sm:$0xff]
    %v152 = vld [vmem:[%s2 + $0x20] sm:$0xff]
    %v153 = vld [vmem:[%s2 + $0x28] sm:$0xff]
    %v154 = vld [vmem:[%s2 + $0x30] sm:$0xff]
    %v155 = vld [vmem:[%s2 + $0x38] sm:$0xff]
    %v156 = vld [vmem:[%s2 + $0x40] sm:$0xff]
    %v157 = vld [vmem:[%s2 + $0x48] sm:$0xff]
    %v158 = vld [vmem:[%s2 + $0x50] sm:$0xff]
    %v159 = vld [vmem:[%s2 + $0x58] sm:$0xff]
    %v160 = vld [vmem:[%s2 + $0x60] sm:$0xff]
    %v161 = vld [vmem:[%s2 + $0x68] sm:$0xff]
    %v162 = vld [vmem:[%s2 + $0x70] sm:$0xff]
    %v163 = vld [vmem:[%s2 + $0x78] sm:$0xff]
    %v164 = vld [vmem:[%s2 + $0x80] sm:$0xff]
    %v165 = vld [vmem:[%s2 + $0x88] sm:$0xff]
    %v166 = vld [vmem:[%s2 + $0x90] sm:$0xff]
    %v167 = vld [vmem:[%s2 + $0x98] sm:$0xff]
    %v168 = vld [vmem:[%s2 + $0xa0] sm:$0xff]
    %v169 = vld [vmem:[%s2 + $0xa8] sm:$0xff]
    %v170 = vld [vmem:[%s2 + $0xb0] sm:$0xff]
    %v171 = vld [vmem:[%s2 + $0xb8] sm:$0xff]
    %v172 = vld [vmem:[%s2 + $0xc0] sm:$0xff]
    %v173 = vld [vmem:[%s2 + $0xc8] sm:$0xff]
    %v174 = vld [vmem:[%s2 + $0xd0] sm:$0xff]
    %v175 = vld [vmem:[%s2 + $0xd8] sm:$0xff]
    %v176 = vld [vmem:[%s2 + $0xe0] sm:$0xff]
    %v177 = vld [vmem:[%s2 + $0xe8] sm:$0xff]
    %v178 = vld [vmem:[%s2 + $0xf0] sm:$0xff]
    %v179 = vld [vmem:[%s2 + $0xf8] sm:$0xff]
    %v180 = vlaneseq
    %v181 = vshrl.u32 %v180, 7
    %v182 = vsub.s32 2, %v181
    %v183 = vrot.slane %v22, %v182
    %v184 = vlaneseq
    %v185 = vshrl.u32 %v184, 7
    %v186 = vsub.s32 2, %v185
    %v187 = vrot.slane %v146, %v186
    %v220 = vunpack.c.l.b16 %v148
    %v221 = vunpack.c.h.b16 %v148
    %v222 = vunpack.c.l.b16 %v149
    %v223 = vunpack.c.h.b16 %v149
    %v224 = vunpack.c.l.b16 %v150
    %v225 = vunpack.c.h.b16 %v150
    %v226 = vunpack.c.l.b16 %v151
    %v227 = vunpack.c.h.b16 %v151
    %v228 = vunpack.c.l.b16 %v152
    %v229 = vunpack.c.h.b16 %v152
    %v230 = vunpack.c.l.b16 %v153
    %v231 = vunpack.c.h.b16 %v153
    %v232 = vunpack.c.l.b16 %v154
    %v233 = vunpack.c.h.b16 %v154
    %v234 = vunpack.c.l.b16 %v155
    %v235 = vunpack.c.h.b16 %v155
    %v236 = vunpack.c.l.b16 %v156
    %v237 = vunpack.c.h.b16 %v156
    %v238 = vunpack.c.l.b16 %v157
    %v239 = vunpack.c.h.b16 %v157
    %v240 = vunpack.c.l.b16 %v158
    %v241 = vunpack.c.h.b16 %v158
    %v242 = vunpack.c.l.b16 %v159
    %v243 = vunpack.c.h.b16 %v159
    %v244 = vunpack.c.l.b16 %v160
    %v245 = vunpack.c.h.b16 %v160
    %v246 = vunpack.c.l.b16 %v161
    %v247 = vunpack.c.h.b16 %v161
    %v248 = vunpack.c.l.b16 %v162
    %v249 = vunpack.c.h.b16 %v162
    %v250 = vunpack.c.l.b16 %v163
    %v251 = vunpack.c.h.b16 %v163
    %v252 = vunpack.c.l.b16 %v164
    %v253 = vunpack.c.h.b16 %v164
    %v254 = vunpack.c.l.b16 %v165
    %v255 = vunpack.c.h.b16 %v165
    %v256 = vunpack.c.l.b16 %v166
    %v257 = vunpack.c.h.b16 %v166
    %v258 = vunpack.c.l.b16 %v167
    %v259 = vunpack.c.h.b16 %v167
    %v260 = vunpack.c.l.b16 %v168
    %v261 = vunpack.c.h.b16 %v168
    %v262 = vunpack.c.l.b16 %v169
    %v263 = vunpack.c.h.b16 %v169
    %v264 = vunpack.c.l.b16 %v170
    %v265 = vunpack.c.h.b16 %v170
    %v266 = vunpack.c.l.b16 %v171
    %v267 = vunpack.c.h.b16 %v171
    %v268 = vunpack.c.l.b16 %v172
    %v269 = vunpack.c.h.b16 %v172
    %v270 = vunpack.c.l.b16 %v173
    %v271 = vunpack.c.h.b16 %v173
    %v272 = vunpack.c.l.b16 %v174
    %v273 = vunpack.c.h.b16 %v174
    %v274 = vunpack.c.l.b16 %v175
    %v275 = vunpack.c.h.b16 %v175
    %v276 = vunpack.c.l.b16 %v176
    %v277 = vunpack.c.h.b16 %v176
    %v278 = vunpack.c.l.b16 %v177
    %v279 = vunpack.c.h.b16 %v177
    %v280 = vunpack.c.l.b16 %v178
    %v281 = vunpack.c.h.b16 %v178
    %v282 = vunpack.c.l.b16 %v179
    %v283 = vunpack.c.h.b16 %v179
    %v284 = vpack.c.b16 %v222, %v220
    %v285 = vpack.c.b16 %v223, %v221
    %v286 = vpack.c.b16 %v226, %v224
    %v287 = vpack.c.b16 %v227, %v225
    %v288 = vpack.c.b16 %v230, %v228
    %v289 = vpack.c.b16 %v231, %v229
    %v290 = vpack.c.b16 %v234, %v232
    %v291 = vpack.c.b16 %v235, %v233
    %v292 = vpack.c.b16 %v238, %v236
    %v293 = vpack.c.b16 %v239, %v237
    %v294 = vpack.c.b16 %v242, %v240
    %v295 = vpack.c.b16 %v243, %v241
    %v296 = vpack.c.b16 %v246, %v244
    %v297 = vpack.c.b16 %v247, %v245
    %v298 = vpack.c.b16 %v250, %v248
    %v299 = vpack.c.b16 %v251, %v249
    %v300 = vpack.c.b16 %v254, %v252
    %v301 = vpack.c.b16 %v255, %v253
    %v302 = vpack.c.b16 %v258, %v256
    %v303 = vpack.c.b16 %v259, %v257
    %v304 = vpack.c.b16 %v262, %v260
    %v305 = vpack.c.b16 %v263, %v261
    %v306 = vpack.c.b16 %v266, %v264
    %v307 = vpack.c.b16 %v267, %v265
    %v308 = vpack.c.b16 %v270, %v268
    %v309 = vpack.c.b16 %v271, %v269
    %v310 = vpack.c.b16 %v274, %v272
    %v311 = vpack.c.b16 %v275, %v273
    %v312 = vpack.c.b16 %v278, %v276
    %v313 = vpack.c.b16 %v279, %v277
    %v314 = vpack.c.b16 %v282, %v280
    %v315 = vpack.c.b16 %v283, %v281
    %348 = vmatprep.subr.bf16.mxu0 %v299
    %349 = vmatpush1.bf16.msra.mxu0 %v298
    %350 = vmatprep.subr.bf16.mxu0 %v297
    %351 = vmatpush1.bf16.msra.mxu0 %v296
    %352 = vmatprep.subr.bf16.mxu0 %v295
    %353 = vmatpush1.bf16.msra.mxu0 %v294
    %354 = vmatprep.subr.bf16.mxu0 %v293
    %355 = vmatpush1.bf16.msra.mxu0 %v292
    %356 = vmatprep.subr.bf16.mxu0 %v291
    %357 = vmatpush1.bf16.msra.mxu0 %v290
    %358 = vmatprep.subr.bf16.mxu0 %v289
    %359 = vmatpush1.bf16.msra.mxu0 %v288
    %360 = vmatprep.subr.bf16.mxu0 %v287
    %361 = vmatpush1.bf16.msra.mxu0 %v286
    %362 = vmatprep.subr.bf16.mxu0 %v285
    %363 = vmatpush1.bf16.msra.mxu0 %v284
    %364 = vmatprep.subr.bf16.mxu0 %v315
    %365 = vmatpush2.bf16.msra.mxu0 %v314
    %366 = vmatprep.subr.bf16.mxu0 %v313
    %367 = vmatpush2.bf16.msra.mxu0 %v312
    %368 = vmatprep.subr.bf16.mxu0 %v311
    %369 = vmatpush2.bf16.msra.mxu0 %v310
    %370 = vmatprep.subr.bf16.mxu0 %v309
    %371 = vmatpush2.bf16.msra.mxu0 %v308
    %372 = vmatprep.subr.bf16.mxu0 %v307
    %373 = vmatpush2.bf16.msra.mxu0 %v306
    %374 = vmatprep.subr.bf16.mxu0 %v305
    %375 = vmatpush2.bf16.msra.mxu0 %v304
    %376 = vmatprep.subr.bf16.mxu0 %v303
    %377 = vmatpush2.bf16.msra.mxu0 %v302
    %378 = vmatprep.subr.bf16.mxu0 %v301
    %379 = vmatpush2.bf16.msra.mxu0 %v300
    %380 = vmatprep.mubr.bf16.mxu0 %v144
    %381 = vmatmul.mubr.bf16.gmra.mxu0 %v24
    %v382 = vpop.f32.mrf.mxu0
    %v383 = vadd.f32 %v183, %v382
    %v384 = vpop.f32.mrf.mxu0
    %v385 = vadd.f32 %v187, %v384
    %v386 = vpop.f32.mrf.mxu0
    %v387 = vpop.f32.mrf.mxu0
    %388 = vdwg.mxu0
    %v389 = vmul.f32 %v383, 0.5
    %v390 = vmul.f32 %v385, 0.5
    %v391 = vtanh.pop %v389
    %v392 = vtanh.pop %v390
    %v393 = vadd.f32 %v391, 1.0
    %v394 = vadd.f32 %v392, 1.0
    %v395 = vmul.f32 %v389, %v393
    %v396 = vmul.f32 %v390, %v394
    %v397 = vld [vmem:[%s3] sm:$0xf]
    %v398 = vld [vmem:[%s3 + $0x4] sm:$0xf]
    %v399 = vld [vmem:[%s3 + $0x8] sm:$0xf]
    %v400 = vld [vmem:[%s3 + $0xc] sm:$0xf]
    %v401 = vld [vmem:[%s3 + $0x10] sm:$0xf]
    %v402 = vld [vmem:[%s3 + $0x14] sm:$0xf]
    %v403 = vld [vmem:[%s3 + $0x18] sm:$0xf]
    %v404 = vld [vmem:[%s3 + $0x1c] sm:$0xf]
    %v405 = vld [vmem:[%s3 + $0x20] sm:$0xf]
    %v406 = vld [vmem:[%s3 + $0x24] sm:$0xf]
    %v407 = vld [vmem:[%s3 + $0x28] sm:$0xf]
    %v408 = vld [vmem:[%s3 + $0x2c] sm:$0xf]
    %v409 = vld [vmem:[%s3 + $0x30] sm:$0xf]
    %v410 = vld [vmem:[%s3 + $0x34] sm:$0xf]
    %v411 = vld [vmem:[%s3 + $0x38] sm:$0xf]
    %v412 = vld [vmem:[%s3 + $0x3c] sm:$0xf]
    %v413 = vld [vmem:[%s3 + $0x40] sm:$0xf]
    %v414 = vld [vmem:[%s3 + $0x44] sm:$0xf]
    %v415 = vld [vmem:[%s3 + $0x48] sm:$0xf]
    %v416 = vld [vmem:[%s3 + $0x4c] sm:$0xf]
    %v417 = vld [vmem:[%s3 + $0x50] sm:$0xf]
    %v418 = vld [vmem:[%s3 + $0x54] sm:$0xf]
    %v419 = vld [vmem:[%s3 + $0x58] sm:$0xf]
    %v420 = vld [vmem:[%s3 + $0x5c] sm:$0xf]
    %v421 = vld [vmem:[%s3 + $0x60] sm:$0xf]
    %v422 = vld [vmem:[%s3 + $0x64] sm:$0xf]
    %v423 = vld [vmem:[%s3 + $0x68] sm:$0xf]
    %v424 = vld [vmem:[%s3 + $0x6c] sm:$0xf]
    %v425 = vld [vmem:[%s3 + $0x70] sm:$0xf]
    %v426 = vld [vmem:[%s3 + $0x74] sm:$0xf]
    %v427 = vld [vmem:[%s3 + $0x78] sm:$0xf]
    %v428 = vld [vmem:[%s3 + $0x7c] sm:$0xf]
    %v429 = vpack.c.bf16 %v395, %v395
    %v430 = vpack.c.bf16 %v396, %v396
    %v431 = vlaneseq
    %v432 = vshrl.u32 %v431, 7
    %v433 = vsub.s32 4, %v432
    %v434 = vrot.slane %v22, %v433
    %v467 = vunpack.c.l.b16 %v397
    %v468 = vunpack.c.l.b16 %v398
    %v469 = vunpack.c.l.b16 %v399
    %v470 = vunpack.c.l.b16 %v400
    %v471 = vunpack.c.l.b16 %v401
    %v472 = vunpack.c.l.b16 %v402
    %v473 = vunpack.c.l.b16 %v403
    %v474 = vunpack.c.l.b16 %v404
    %v475 = vunpack.c.l.b16 %v405
    %v476 = vunpack.c.l.b16 %v406
    %v477 = vunpack.c.l.b16 %v407
    %v478 = vunpack.c.l.b16 %v408
    %v479 = vunpack.c.l.b16 %v409
    %v480 = vunpack.c.l.b16 %v410
    %v481 = vunpack.c.l.b16 %v411
    %v482 = vunpack.c.l.b16 %v412
    %v483 = vunpack.c.l.b16 %v413
    %v484 = vunpack.c.l.b16 %v414
    %v485 = vunpack.c.l.b16 %v415
    %v486 = vunpack.c.l.b16 %v416
    %v487 = vunpack.c.l.b16 %v417
    %v488 = vunpack.c.l.b16 %v418
    %v489 = vunpack.c.l.b16 %v419
    %v490 = vunpack.c.l.b16 %v420
    %v491 = vunpack.c.l.b16 %v421
    %v492 = vunpack.c.l.b16 %v422
    %v493 = vunpack.c.l.b16 %v423
    %v494 = vunpack.c.l.b16 %v424
    %v495 = vunpack.c.l.b16 %v425
    %v496 = vunpack.c.l.b16 %v426
    %v497 = vunpack.c.l.b16 %v427
    %v498 = vunpack.c.l.b16 %v428
    %v499 = vpack.c.b16 %v468, %v467
    %v500 = vpack.c.b16 %v470, %v469
    %v501 = vpack.c.b16 %v472, %v471
    %v502 = vpack.c.b16 %v474, %v473
    %v503 = vpack.c.b16 %v476, %v475
    %v504 = vpack.c.b16 %v478, %v477
    %v505 = vpack.c.b16 %v480, %v479
    %v506 = vpack.c.b16 %v482, %v481
    %v507 = vpack.c.b16 %v484, %v483
    %v508 = vpack.c.b16 %v486, %v485
    %v509 = vpack.c.b16 %v488, %v487
    %v510 = vpack.c.b16 %v490, %v489
    %v511 = vpack.c.b16 %v492, %v491
    %v512 = vpack.c.b16 %v494, %v493
    %v513 = vpack.c.b16 %v496, %v495
    %v514 = vpack.c.b16 %v498, %v497
    %531 = vmatprep.subr.bf16.mxu0 0
    %532 = vmatpush1.bf16.msra.mxu0 %v506
    %533 = vmatprep.subr.bf16.mxu0 0
    %534 = vmatpush1.bf16.msra.mxu0 %v505
    %535 = vmatprep.subr.bf16.mxu0 0
    %536 = vmatpush1.bf16.msra.mxu0 %v504
    %537 = vmatprep.subr.bf16.mxu0 0
    %538 = vmatpush1.bf16.msra.mxu0 %v503
    %539 = vmatprep.subr.bf16.mxu0 0
    %540 = vmatpush1.bf16.msra.mxu0 %v502
    %541 = vmatprep.subr.bf16.mxu0 0
    %542 = vmatpush1.bf16.msra.mxu0 %v501
    %543 = vmatprep.subr.bf16.mxu0 0
    %544 = vmatpush1.bf16.msra.mxu0 %v500
    %545 = vmatprep.subr.bf16.mxu0 0
    %546 = vmatpush1.bf16.msra.mxu0 %v499
    %547 = vmatprep.subr.bf16.mxu0 0
    %548 = vmatpush2.bf16.msra.mxu0 %v514
    %549 = vmatprep.subr.bf16.mxu0 0
    %550 = vmatpush2.bf16.msra.mxu0 %v513
    %551 = vmatprep.subr.bf16.mxu0 0
    %552 = vmatpush2.bf16.msra.mxu0 %v512
    %553 = vmatprep.subr.bf16.mxu0 0
    %554 = vmatpush2.bf16.msra.mxu0 %v511
    %555 = vmatprep.subr.bf16.mxu0 0
    %556 = vmatpush2.bf16.msra.mxu0 %v510
    %557 = vmatprep.subr.bf16.mxu0 0
    %558 = vmatpush2.bf16.msra.mxu0 %v509
    %559 = vmatprep.subr.bf16.mxu0 0
    %560 = vmatpush2.bf16.msra.mxu0 %v508
    %561 = vmatprep.subr.bf16.mxu0 0
    %562 = vmatpush2.bf16.msra.mxu0 %v507
    %563 = vmatprep.mubr.bf16.mxu0 %v430
    %564 = vmatmul.mubr.bf16.gmra.mxu0 %v429
    %v565 = vpop.f32.mrf.mxu0
    %v566 = vadd.f32 %v434, %v565
    %v567 = vpop.f32.mrf.mxu0
    %v568 = vpop.f32.mrf.mxu0
    %v569 = vpop.f32.mrf.mxu0
    %570 = vdwg.mxu0
    %v571 = vld [vmem:[%s3 + $0x80] sm:$0xf]
    %v572 = vld [vmem:[%s3 + $0x84] sm:$0xf]
    %v573 = vld [vmem:[%s3 + $0x88] sm:$0xf]
    %v574 = vld [vmem:[%s3 + $0x8c] sm:$0xf]
    %v575 = vld [vmem:[%s3 + $0x90] sm:$0xf]
    %v576 = vld [vmem:[%s3 + $0x94] sm:$0xf]
    %v577 = vld [vmem:[%s3 + $0x98] sm:$0xf]
    %v578 = vld [vmem:[%s3 + $0x9c] sm:$0xf]
    %v579 = vld [vmem:[%s3 + $0xa0] sm:$0xf]
    %v580 = vld [vmem:[%s3 + $0xa4] sm:$0xf]
    %v581 = vld [vmem:[%s3 + $0xa8] sm:$0xf]
    %v582 = vld [vmem:[%s3 + $0xac] sm:$0xf]
    %v583 = vld [vmem:[%s3 + $0xb0] sm:$0xf]
    %v584 = vld [vmem:[%s3 + $0xb4] sm:$0xf]
    %v585 = vld [vmem:[%s3 + $0xb8] sm:$0xf]
    %v586 = vld [vmem:[%s3 + $0xbc] sm:$0xf]
    %v587 = vpack.c.bf16 %v566, %v566
    %v588 = vlaneseq
    %v589 = vshrl.u32 %v588, 7
    %v590 = vsub.s32 5, %v589
    %v591 = vrot.slane %v22, %v590
    %v608 = vunpack.c.l.b16 %v571
    %v609 = vunpack.c.l.b16 %v572
    %v610 = vunpack.c.l.b16 %v573
    %v611 = vunpack.c.l.b16 %v574
    %v612 = vunpack.c.l.b16 %v575
    %v613 = vunpack.c.l.b16 %v576
    %v614 = vunpack.c.l.b16 %v577
    %v615 = vunpack.c.l.b16 %v578
    %v616 = vunpack.c.l.b16 %v579
    %v617 = vunpack.c.l.b16 %v580
    %v618 = vunpack.c.l.b16 %v581
    %v619 = vunpack.c.l.b16 %v582
    %v620 = vunpack.c.l.b16 %v583
    %v621 = vunpack.c.l.b16 %v584
    %v622 = vunpack.c.l.b16 %v585
    %v623 = vunpack.c.l.b16 %v586
    %v624 = vpack.c.b16 %v609, %v608
    %v625 = vpack.c.b16 %v611, %v610
    %v626 = vpack.c.b16 %v613, %v612
    %v627 = vpack.c.b16 %v615, %v614
    %v628 = vpack.c.b16 %v617, %v616
    %v629 = vpack.c.b16 %v619, %v618
    %v630 = vpack.c.b16 %v621, %v620
    %v631 = vpack.c.b16 %v623, %v622
    %640 = vmatprep.subr.bf16.mxu0 0
    %641 = vmatpush1.bf16.msra.mxu0 %v631
    %642 = vmatprep.subr.bf16.mxu0 0
    %643 = vmatpush1.bf16.msra.mxu0 %v630
    %644 = vmatprep.subr.bf16.mxu0 0
    %645 = vmatpush1.bf16.msra.mxu0 %v629
    %646 = vmatprep.subr.bf16.mxu0 0
    %647 = vmatpush1.bf16.msra.mxu0 %v628
    %648 = vmatprep.subr.bf16.mxu0 0
    %649 = vmatpush1.bf16.msra.mxu0 %v627
    %650 = vmatprep.subr.bf16.mxu0 0
    %651 = vmatpush1.bf16.msra.mxu0 %v626
    %652 = vmatprep.subr.bf16.mxu0 0
    %653 = vmatpush1.bf16.msra.mxu0 %v625
    %654 = vmatprep.subr.bf16.mxu0 0
    %655 = vmatpush1.bf16.msra.mxu0 %v624
    %656 = vmatprep.subr.bf16.mxu0 0
    %657 = vmatpush2.bf16.msra.mxu0 0
    %658 = vmatprep.subr.bf16.mxu0 0
    %659 = vmatpush2.bf16.msra.mxu0 0
    %660 = vmatprep.subr.bf16.mxu0 0
    %661 = vmatpush2.bf16.msra.mxu0 0
    %662 = vmatprep.subr.bf16.mxu0 0
    %663 = vmatpush2.bf16.msra.mxu0 0
    %664 = vmatprep.subr.bf16.mxu0 0
    %665 = vmatpush2.bf16.msra.mxu0 0
    %666 = vmatprep.subr.bf16.mxu0 0
    %667 = vmatpush2.bf16.msra.mxu0 0
    %668 = vmatprep.subr.bf16.mxu0 0
    %669 = vmatpush2.bf16.msra.mxu0 0
    %670 = vmatprep.subr.bf16.mxu0 0
    %671 = vmatpush2.bf16.msra.mxu0 0
    %672 = vmatprep.mubr.bf16.mxu0 0
    %673 = vmatmul.mubr.bf16.gmra.mxu0 %v587
    %v674 = vpop.f32.mrf.mxu0
    %v675 = vadd.f32 %v591, %v674
    %v676 = vpop.f32.mrf.mxu0
    %v677 = vpop.f32.mrf.mxu0
    %v678 = vpop.f32.mrf.mxu0
    %679 = vdwg.mxu0
    %v680 = vmul.f32 %v675, 0.5
    %v681 = vtanh.pop %v680
    %v682 = vadd.f32 %v681, 1.0
    %v683 = vmul.f32 %v680, %v682
    %v684 = vld [vmem:[%s3 + $0xc0] sm:$0xf]
    %v685 = vld [vmem:[%s3 + $0xc4] sm:$0xf]
    %v686 = vld [vmem:[%s3 + $0xc8] sm:$0xf]
    %v687 = vld [vmem:[%s3 + $0xcc] sm:$0xf]
    %v688 = vld [vmem:[%s3 + $0xd0] sm:$0xf]
    %v689 = vld [vmem:[%s3 + $0xd4] sm:$0xf]
    %v690 = vld [vmem:[%s3 + $0xd8] sm:$0xf]
    %v691 = vld [vmem:[%s3 + $0xdc] sm:$0xf]
    %v692 = vld [vmem:[%s3 + $0xe0] sm:$0xf]
    %v693 = vld [vmem:[%s3 + $0xe4] sm:$0xf]
    %v694 = vld [vmem:[%s3 + $0xe8] sm:$0xf]
    %v695 = vld [vmem:[%s3 + $0xec] sm:$0xf]
    %v696 = vld [vmem:[%s3 + $0xf0] sm:$0xf]
    %v697 = vld [vmem:[%s3 + $0xf4] sm:$0xf]
    %v698 = vld [vmem:[%s3 + $0xf8] sm:$0xf]
    %v699 = vld [vmem:[%s3 + $0xfc] sm:$0xf]
    %v700 = vpack.c.bf16 %v683, %v683
    %v717 = vunpack.c.l.b16 %v684
    %v718 = vunpack.c.l.b16 %v685
    %v719 = vunpack.c.l.b16 %v686
    %v720 = vunpack.c.l.b16 %v687
    %v721 = vunpack.c.l.b16 %v688
    %v722 = vunpack.c.l.b16 %v689
    %v723 = vunpack.c.l.b16 %v690
    %v724 = vunpack.c.l.b16 %v691
    %v725 = vunpack.c.l.b16 %v692
    %v726 = vunpack.c.l.b16 %v693
    %v727 = vunpack.c.l.b16 %v694
    %v728 = vunpack.c.l.b16 %v695
    %v729 = vunpack.c.l.b16 %v696
    %v730 = vunpack.c.l.b16 %v697
    %v731 = vunpack.c.l.b16 %v698
    %v732 = vunpack.c.l.b16 %v699
    %v733 = vpack.c.b16 %v718, %v717
    %v734 = vpack.c.b16 %v720, %v719
    %v735 = vpack.c.b16 %v722, %v721
    %v736 = vpack.c.b16 %v724, %v723
    %v737 = vpack.c.b16 %v726, %v725
    %v738 = vpack.c.b16 %v728, %v727
    %v739 = vpack.c.b16 %v730, %v729
    %v740 = vpack.c.b16 %v732, %v731
    %749 = vmatprep.subr.bf16.mxu0 0
    %750 = vmatpush1.bf16.msra.mxu0 %v740
    %751 = vmatprep.subr.bf16.mxu0 0
    %752 = vmatpush1.bf16.msra.mxu0 %v739
    %753 = vmatprep.subr.bf16.mxu0 0
    %754 = vmatpush1.bf16.msra.mxu0 %v738
    %755 = vmatprep.subr.bf16.mxu0 0
    %756 = vmatpush1.bf16.msra.mxu0 %v737
    %757 = vmatprep.subr.bf16.mxu0 0
    %758 = vmatpush1.bf16.msra.mxu0 %v736
    %759 = vmatprep.subr.bf16.mxu0 0
    %760 = vmatpush1.bf16.msra.mxu0 %v735
    %761 = vmatprep.subr.bf16.mxu0 0
    %762 = vmatpush1.bf16.msra.mxu0 %v734
    %763 = vmatprep.subr.bf16.mxu0 0
    %764 = vmatpush1.bf16.msra.mxu0 %v733
    %765 = vmatprep.subr.bf16.mxu0 0
    %766 = vmatpush2.bf16.msra.mxu0 0
    %767 = vmatprep.subr.bf16.mxu0 0
    %768 = vmatpush2.bf16.msra.mxu0 0
    %769 = vmatprep.subr.bf16.mxu0 0
    %770 = vmatpush2.bf16.msra.mxu0 0
    %771 = vmatprep.subr.bf16.mxu0 0
    %772 = vmatpush2.bf16.msra.mxu0 0
    %773 = vmatprep.subr.bf16.mxu0 0
    %774 = vmatpush2.bf16.msra.mxu0 0
    %775 = vmatprep.subr.bf16.mxu0 0
    %776 = vmatpush2.bf16.msra.mxu0 0
    %777 = vmatprep.subr.bf16.mxu0 0
    %778 = vmatpush2.bf16.msra.mxu0 0
    %779 = vmatprep.subr.bf16.mxu0 0
    %780 = vmatpush2.bf16.msra.mxu0 0
    %781 = vmatprep.mubr.bf16.mxu0 0
    %782 = vmatmul.mubr.bf16.gmra.mxu0 %v700
    %v783 = vpop.f32.mrf.mxu0
    %v784 = vadd.f32 0.0, %v783
    %v785 = vpop.f32.mrf.mxu0
    %v786 = vpop.f32.mrf.mxu0
    %v787 = vpop.f32.mrf.mxu0
    %788 = vdwg.mxu0
    %v789 = vlaneseq
    %v790 = vshrl.u32 %v789, 7
    %v791 = vsub.s32 6, %v790
    %v792 = vrot.slane %v22, %v791
    %v793 = vsub.f32 %v25, %v792
    %v794 = vsub.f32 %v793, %v784
    %795 = vst [vmem:[#allocation2] sm:$0xff] %v794
    // Predicated region
    $region22: #{_dynamics_forward.1} parent=1 // pred_check
      _
    $region23: #{_dynamics_forward.1} parent=1 // pred_check_branch
      %797 = sbr.rel (0) target = $region25
    $region24: #{_dynamics_forward.1} parent=1 // pred_region
      %s799 = ssub.s32 128, 128
      %800 = vsyncadd [#allocation3], %s799
      %s802 = sshll.u32 [#allocation2], 4
      %s803 = int_to_ptr.vmem [resolvable:$true] %s802
      %805 = dma.vmem_to_hbm [thread:$0]  %s803, 128, %s5, [#allocation3]
    $region25: #{_dynamics_forward.1} parent=1 // pred_fallthru
      _
    // Predicated region
    $region26: #{_dynamics_forward.1} parent=1 // pred_check
      _
    $region27: #{_dynamics_forward.1} parent=1 // pred_check_branch
      %807 = sbr.rel (0) target = $region29
    $region28: #{_dynamics_forward.1} parent=1 // pred_region
      %808 = dma.done [#allocation3], 128
    $region29: #{_dynamics_forward.1} parent=1 // pred_fallthru
      _
    %809 = vsyncpa [#allocation3], 1

</llo_original>
